<compile_context>
chip_gen: v7x
topology: tpu7x:2x2x1
jax: 0.10.0
libtpu: 0.0.40
codegen_flags: <defaults>
</compile_context>

<pallas_src>
import functools
import math

import jax
import jax.numpy as jnp
from jax import lax
from jax.experimental import pallas as pl
from jax.experimental.pallas import tpu as pltpu

# ----- module hyper-parameters (synthetic, deterministic) --------------------
BIT = 4                       # 2**BIT = 16
PROFILE_PARAM_SEQ = 4         # S
MAX_PROFILE = 8
DISCRIMINATOR_CONFIG = {"embed_dim": 32}

EMBED_DIM = DISCRIMINATOR_CONFIG["embed_dim"]
FEAT_IN = 2 ** BIT + PROFILE_PARAM_SEQ      # 20
LOGISTIC_OUT = 32
BN_EPS = 1e-5
LEAKY_SLOPE = 0.01

TARGET_TILE_ROWS = 4096       # rows per grid step for large B*N


def _leaky(x):
    return jnp.where(x >= 0, x, LEAKY_SLOPE * x)


# ----- fused Pallas kernel ----------------------------------------------------
def _fused_kernel(coord_ref, wf_ref, bf_ref, gamma_ref, beta_ref, bias_ref,
                  w3_ref, out_ref, h_ref, stats_ref, *,
                  bn_rows, tile_rows, resident, ragged):
    """grid = (phase, tile).

    phase 0: h = coord @ w_fused + b_fused; stash h in VMEM slab (if resident);
             fold (count, mean, M2) BatchNorm stats into a persistent scratch.
    phase 1: BN affine + LeakyReLU + fc (+ folded PE bias) + LeakyReLU -> out.

    coord_ref: [T, S*F]   wf_ref: [S*F, E]   bf_ref/gamma/beta: [1, E]
    bias_ref:  [T, 1] (pe@w3 + b3, per row mod N)   w3_ref: [E, 1]
    out_ref:   [T, 1]   h_ref: [slots, T, E] scratch   stats_ref: [3, E] scratch
    """
    p = pl.program_id(0)
    i = pl.program_id(1)

    def embed():
        return jnp.dot(coord_ref[...], wf_ref[...],
                       preferred_element_type=jnp.float32) + bf_ref[...]

    @pl.when(p == 0)
    def _phase0():
        h = embed()
        if resident:
            h_ref[i] = h

        if ragged:
            # mask rows past the real B*N (ragged last tile) for exact stats
            row = (i * tile_rows
                   + lax.broadcasted_iota(jnp.int32, (tile_rows, 1), 0))
            mask = row < bn_rows
            cnt = jnp.minimum(tile_rows,
                              bn_rows - i * tile_rows).astype(jnp.float32)
            hm = jnp.where(mask, h, 0.0)
        else:
            cnt = jnp.float32(tile_rows)
            hm = h

        mean_t = jnp.sum(hm, axis=0, keepdims=True) / cnt            # [1, E]
        cen = hm - mean_t
        if ragged:
            cen = jnp.where(mask, cen, 0.0)
        m2_t = jnp.sum(cen * cen, axis=0, keepdims=True)              # [1, E]
        cnt_row = jnp.zeros((1, EMBED_DIM), jnp.float32) + cnt

        @pl.when(i == 0)
        def _():
            stats_ref[0:1, :] = cnt_row
            stats_ref[1:2, :] = mean_t
            stats_ref[2:3, :] = m2_t

        @pl.when(i > 0)
        def _():
            # Chan / Welford parallel combine (numerically stable)
            n_a = stats_ref[0:1, :]
            mean_a = stats_ref[1:2, :]
            m2_a = stats_ref[2:3, :]
            n_ab = n_a + cnt_row
            delta = mean_t - mean_a
            stats_ref[0:1, :] = n_ab
            stats_ref[1:2, :] = mean_a + delta * (cnt_row / n_ab)
            stats_ref[2:3, :] = m2_a + m2_t + delta * delta * (n_a * cnt_row / n_ab)

    @pl.when(p == 1)
    def _phase1():
        mean = stats_ref[1:2, :]
        var = stats_ref[2:3, :] / stats_ref[0:1, :]     # biased var (PyTorch BN)
        inv_std = lax.rsqrt(var + BN_EPS)
        scale = gamma_ref[...] * inv_std
        shift = beta_ref[...] - mean * scale

        h = h_ref[i] if resident else embed()            # VMEM slab or recompute
        y = _leaky(h * scale + shift)
        z = jnp.dot(y, w3_ref[...],
                    preferred_element_type=jnp.float32) + bias_ref[...]
        out_ref[...] = _leaky(z)


# ----- wrapper ----------------------------------------------------------------
def _vmem_limit_and_budget():
    try:
        cap = int(pltpu.get_tpu_info().vmem_capacity_bytes)
    except Exception:
        cap = 64 * 1024 * 1024           # conservative: v7x per-TC VMEM
    # v7x (64 MiB): limit 48 MiB, h-slab budget 24 MiB
    # v5e/v6e (128 MiB): limit 64 MiB, h-slab budget 32 MiB
    vmem_limit = max(32 * 1024 * 1024,
                     min(cap - 16 * 1024 * 1024, 64 * 1024 * 1024))
    return vmem_limit, vmem_limit // 2


def profile_discriminator_forward(coord, params, *,
                                  target_tile_rows=TARGET_TILE_ROWS,
                                  force_recompute=False):
    """coord: [B, N, S, F] float32 -> classification [N, B, 1] float32."""
    B, N, S, F = coord.shape
    BN, SF = B * N, S * F

    # row tile: multiple of lcm(N, 8) so one [T,1] pe/fc bias block is shared
    # by every tile and sublane tiling is respected; single tile covers the
    # whole batch when it is small (no jnp.pad — ragged last block otherwise).
    base = N * 8 // math.gcd(N, 8)
    if BN <= target_tile_rows:
        tile_rows = pl.cdiv(BN, base) * base
    else:
        tile_rows = max(base, (target_tile_rows // base) * base)
    num_tiles = pl.cdiv(BN, tile_rows)
    ragged = (BN % tile_rows) != 0

    vmem_limit, h_budget = _vmem_limit_and_budget()
    # h slab VMEM footprint (lane dim pads 32 -> 128)
    h_slab_bytes = num_tiles * tile_rows * max(EMBED_DIM, 128) * 4
    resident = (h_slab_bytes <= h_budget) and not force_recompute
    num_h_slots = num_tiles if resident else 1

    coord2d = coord.reshape(BN, SF)                       # [BN, 80], no padding

    # Exact algebraic fusion of logistic + bbox_fc Linear (no nonlinearity
    # in between):
    #   w_fused[s*F + f, e] = sum_o w1[f, o] * w2[s*32 + o, e]
    #   b_fused = sum_s b1 @ w2[s*32:(s+1)*32, :] + b2
    w2b = params["w2"].reshape(S, LOGISTIC_OUT, EMBED_DIM)
    w_fused = jnp.einsum("fo,soe->sfe", params["w1"], w2b).reshape(SF, EMBED_DIM)
    b_fused = (jnp.einsum("o,soe->e", params["b1"][0], w2b)
               + params["b2"][0])[None, :]

    # Positional encoding folded through fc (exact): bias[n] = pe[n] @ w3 + b3.
    bias_tile = jnp.tile(params["pe"][:N] @ params["w3"] + params["b3"],
                         (tile_rows // N, 1))                          # [T, 1]

    if resident:
        # phase 1 never reads coord: pin its block to the last tile so no
        # redundant coord DMA is issued after phase 0.
        coord_map = lambda p, i: ((1 - p) * i + p * (num_tiles - 1), 0)
    else:
        coord_map = lambda p, i: (i, 0)

    out = pl.pallas_call(
        functools.partial(_fused_kernel, bn_rows=BN, tile_rows=tile_rows,
                          resident=resident, ragged=ragged),
        out_shape=jax.ShapeDtypeStruct((BN, 1), jnp.float32),
        grid=(2, num_tiles),
        in_specs=[pl.BlockSpec((tile_rows, SF), coord_map),
                  pl.BlockSpec((SF, EMBED_DIM), lambda p, i: (0, 0)),
                  pl.BlockSpec((1, EMBED_DIM), lambda p, i: (0, 0)),
                  pl.BlockSpec((1, EMBED_DIM), lambda p, i: (0, 0)),
                  pl.BlockSpec((1, EMBED_DIM), lambda p, i: (0, 0)),
                  pl.BlockSpec((tile_rows, 1), lambda p, i: (0, 0)),
                  pl.BlockSpec((EMBED_DIM, 1), lambda p, i: (0, 0))],
        # out block is only written in phase 1; in phase 0 it is pinned to
        # block 0 so no undefined data is ever flushed to HBM.
        out_specs=pl.BlockSpec((tile_rows, 1), lambda p, i: (p * i, 0)),
        scratch_shapes=[pltpu.VMEM((num_h_slots, tile_rows, EMBED_DIM),
                                   jnp.float32),
                        pltpu.VMEM((3, EMBED_DIM), jnp.float32)],
        compiler_params=pltpu.CompilerParams(
            dimension_semantics=("arbitrary", "arbitrary"),
            vmem_limit_bytes=vmem_limit),
    )(coord2d, w_fused, b_fused, params["gamma"], params["beta"],
      bias_tile, params["w3"])

    # unflatten(0, (B, N)) then transpose(0, 1) -> [N, B, 1]
    return out.reshape(B, N, 1).transpose(1, 0, 2)


# ----- deterministic parameter init / reference -------------------------------
def _linear_init(key, fan_in, fan_out):
    k1, k2 = jax.random.split(key)
    bound = 1.0 / math.sqrt(fan_in)
    w = jax.random.uniform(k1, (fan_in, fan_out), jnp.float32, -bound, bound)
    b = jax.random.uniform(k2, (1, fan_out), jnp.float32, -bound, bound)
    return w, b


def _make_positional_encoding(max_len, d_model):
    position = jnp.arange(max_len, dtype=jnp.float32)[:, None]
    div_term = jnp.exp(jnp.arange(0, d_model, 2, dtype=jnp.float32)
                       * (-math.log(10000.0) / d_model))
    pe = jnp.zeros((max_len, d_model), jnp.float32)
    pe = pe.at[:, 0::2].set(jnp.sin(position * div_term))
    pe = pe.at[:, 1::2].set(jnp.cos(position * div_term))
    return pe
    # TODO(synk): PositionalEncoding's definition is not given; standard
    # sinusoidal PE is used and its dropout is treated as identity (eval mode).


def init_params(key):
    k1, k2, k3 = jax.random.split(key, 3)
    w1, b1 = _linear_init(k1, FEAT_IN, LOGISTIC_OUT)
    w2, b2 = _linear_init(k2, LOGISTIC_OUT * PROFILE_PARAM_SEQ, EMBED_DIM)
    w3, b3 = _linear_init(k3, EMBED_DIM, 1)
    return {
        "w1": w1, "b1": b1,
        "w2": w2, "b2": b2,
        "gamma": jnp.ones((1, EMBED_DIM), jnp.float32),
        "beta": jnp.zeros((1, EMBED_DIM), jnp.float32),
        "w3": w3, "b3": b3,
        "pe": _make_positional_encoding(MAX_PROFILE, EMBED_DIM),
    }


def reference(coord, p):
    """Pure-JAX oracle mirroring the PyTorch forward exactly."""
    B, N, S, F = coord.shape
    l = coord @ p["w1"] + p["b1"][0]                       # [B,N,S,32]
    h = l.reshape(B * N, S * LOGISTIC_OUT) @ p["w2"] + p["b2"][0]
    mean = h.mean(axis=0, keepdims=True)
    var = ((h - mean) ** 2).mean(axis=0, keepdims=True)
    y = (h - mean) / jnp.sqrt(var + BN_EPS) * p["gamma"][0] + p["beta"][0]
    y = jnp.where(y >= 0, y, LEAKY_SLOPE * y)
    ce = y.reshape(B, N, EMBED_DIM).transpose(1, 0, 2)     # [N,B,E]
    ei = ce + p["pe"][:N][:, None, :]
    z = ei @ p["w3"] + p["b3"][0]
    return jnp.where(z >= 0, z, LEAKY_SLOPE * z)           # [N,B,1]


if __name__ == "__main__":
    key = jax.random.PRNGKey(0)
    k_param, k_x1, k_x2 = jax.random.split(key, 3)

    params = init_params(k_param)

    # small shape (single 16-row tile, h resident)
    B, N = 2, MAX_PROFILE
    coord = jax.random.normal(
        k_x1, (B, N, PROFILE_PARAM_SEQ, FEAT_IN), dtype=jnp.float32)
    out = jax.block_until_ready(profile_discriminator_forward(coord, params))
    ref = reference(coord, params)
    assert out.shape == (N, B, 1), out.shape
    assert jnp.allclose(out, ref, atol=1e-4, rtol=1e-4), (
        float(jnp.max(jnp.abs(out - ref))))

    # larger shape, default path: one 640-row tile, no padding, h resident
    B2 = 80
    coord2 = jax.random.normal(
        k_x2, (B2, N, PROFILE_PARAM_SEQ, FEAT_IN), dtype=jnp.float32)
    ref2 = reference(coord2, params)
    out2 = jax.block_until_ready(profile_discriminator_forward(coord2, params))
    assert out2.shape == (N, B2, 1), out2.shape
    assert jnp.allclose(out2, ref2, atol=1e-4, rtol=1e-4), (
        float(jnp.max(jnp.abs(out2 - ref2))))

    # forced multi-tile + ragged last block: exercises the Chan stats combine
    # and the in-kernel row mask
    out3 = jax.block_until_ready(
        profile_discriminator_forward(coord2, params, target_tile_rows=256))
    assert jnp.allclose(out3, ref2, atol=1e-4, rtol=1e-4), (
        float(jnp.max(jnp.abs(out3 - ref2))))

    # forced non-resident path: phase 1 recomputes h from coord (VMEM fallback)
    out4 = jax.block_until_ready(
        profile_discriminator_forward(coord2, params, target_tile_rows=256,
                                      force_recompute=True))
    assert jnp.allclose(out4, ref2, atol=1e-4, rtol=1e-4), (
        float(jnp.max(jnp.abs(out4 - ref2))))

    print("KERNEL_OK")
</pallas_src>

<mosaic_0001>
module attributes {stable_mosaic.version = 11 : i64} {
  func.func @_fused_kernel(%arg0: i32, %arg1: i32, %arg2: memref<16x80xf32, #tpu.memory_space<vmem>>, %arg3: memref<80x32xf32, #tpu.memory_space<vmem>>, %arg4: memref<1x32xf32, #tpu.memory_space<vmem>>, %arg5: memref<1x32xf32, #tpu.memory_space<vmem>>, %arg6: memref<1x32xf32, #tpu.memory_space<vmem>>, %arg7: memref<16x1xf32, #tpu.memory_space<vmem>>, %arg8: memref<32x1xf32, #tpu.memory_space<vmem>>, %arg9: memref<16x1xf32, #tpu.memory_space<vmem>>, %arg10: memref<1x16x32xf32, #tpu.memory_space<vmem>>, %arg11: memref<3x32xf32, #tpu.memory_space<vmem>>) attributes {dimension_semantics = [#tpu.dimension_semantics<arbitrary>, #tpu.dimension_semantics<arbitrary>], iteration_bounds = array<i64: 2, 1>, scalar_prefetch = 0 : i64, scratch_operands = 2 : i64, tpu.core_type = #tpu.core_type<tc>, window_params = [{transform_indices = @transform_0, window_bounds = array<i64: 16, 80>}, {pipeline_mode = #tpu.pipeline_mode<synchronous>, transform_indices = @transform_1, window_bounds = array<i64: 80, 32>}, {pipeline_mode = #tpu.pipeline_mode<synchronous>, transform_indices = @transform_2, window_bounds = array<i64: 1, 32>}, {pipeline_mode = #tpu.pipeline_mode<synchronous>, transform_indices = @transform_3, window_bounds = array<i64: 1, 32>}, {pipeline_mode = #tpu.pipeline_mode<synchronous>, transform_indices = @transform_4, window_bounds = array<i64: 1, 32>}, {pipeline_mode = #tpu.pipeline_mode<synchronous>, transform_indices = @transform_5, window_bounds = array<i64: 16, 1>}, {pipeline_mode = #tpu.pipeline_mode<synchronous>, transform_indices = @transform_6, window_bounds = array<i64: 32, 1>}, {transform_indices = @transform_7, window_bounds = array<i64: 16, 1>}]} {
    %c0_i32 = arith.constant 0 : i32
    %0 = arith.cmpi eq, %arg0, %c0_i32 : i32
    %1 = arith.extui %0 : i1 to i32
    %c0_i32_0 = arith.constant 0 : i32
    %2 = arith.cmpi ne, %1, %c0_i32_0 : i32
    scf.if %2 {
      %c0 = arith.constant 0 : index
      %c0_2 = arith.constant 0 : index
      %6 = vector.load %arg2[%c0, %c0_2] : memref<16x80xf32, #tpu.memory_space<vmem>>, vector<16x80xf32>
      %c0_3 = arith.constant 0 : index
      %c0_4 = arith.constant 0 : index
      %7 = vector.load %arg3[%c0_3, %c0_4] : memref<80x32xf32, #tpu.memory_space<vmem>>, vector<80x32xf32>
      %cst = arith.constant dense<0.000000e+00> : vector<16x32xf32>
      %8 = tpu.matmul %6, %7, %cst {dimension_numbers = #tpu.dot_dimension_numbers<[1], [0], [0], [1], [0, 0, 1, 1], [], []>} : vector<16x80xf32>, vector<80x32xf32>, vector<16x32xf32> -> vector<16x32xf32>
      %c0_5 = arith.constant 0 : index
      %c0_6 = arith.constant 0 : index
      %9 = vector.load %arg4[%c0_5, %c0_6] : memref<1x32xf32, #tpu.memory_space<vmem>>, vector<1x32xf32>
      %10 = vector.broadcast %9 : vector<1x32xf32> to vector<16x32xf32>
      %11 = arith.addf %8, %10 : vector<16x32xf32>
      %12 = arith.index_cast %arg1 : i32 to index
      %c0_7 = arith.constant 0 : index
      %c0_8 = arith.constant 0 : index
      %13 = vector.load %arg10[%12, %c0_7, %c0_8] : memref<1x16x32xf32, #tpu.memory_space<vmem>>, vector<1x16x32xf32>
      %14 = vector.shape_cast %13 : vector<1x16x32xf32> to vector<16x32xf32>
      %15 = vector.shape_cast %11 : vector<16x32xf32> to vector<1x16x32xf32>
      tpu.vector_store %arg10[%12, %c0_7, %c0_8], %15 {strides = array<i32>} : memref<1x16x32xf32, #tpu.memory_space<vmem>>, vector<1x16x32xf32>,
      %cst_9 = arith.constant dense<0.000000e+00> : vector<32xf32>
      %16 = vector.multi_reduction <add>, %11, %cst_9 [0] : vector<16x32xf32> to vector<32xf32>
      %17 = vector.shape_cast %16 : vector<32xf32> to vector<1x32xf32>
      %cst_10 = arith.constant 1.600000e+01 : f32
      %18 = vector.broadcast %cst_10 : f32 to vector<1x32xf32>
      %19 = arith.divf %17, %18 : vector<1x32xf32>
      %20 = vector.broadcast %19 : vector<1x32xf32> to vector<16x32xf32>
      %21 = arith.subf %11, %20 : vector<16x32xf32>
      %22 = arith.mulf %21, %21 : vector<16x32xf32>
      %cst_11 = arith.constant dense<0.000000e+00> : vector<32xf32>
      %23 = vector.multi_reduction <add>, %22, %cst_11 [0] : vector<16x32xf32> to vector<32xf32>
      %24 = vector.shape_cast %23 : vector<32xf32> to vector<1x32xf32>
      %cst_12 = arith.constant 0.000000e+00 : f32
      %25 = vector.broadcast %cst_12 : f32 to vector<1x32xf32>
      %cst_13 = arith.constant 1.600000e+01 : f32
      %26 = vector.broadcast %cst_13 : f32 to vector<1x32xf32>
      %27 = arith.addf %25, %26 : vector<1x32xf32>
      %c0_i32_14 = arith.constant 0 : i32
      %28 = arith.cmpi eq, %arg1, %c0_i32_14 : i32
      %29 = arith.extui %28 : i1 to i32
      %c0_i32_15 = arith.constant 0 : i32
      %30 = arith.cmpi ne, %29, %c0_i32_15 : i32
      scf.if %30 {
        %c0_18 = arith.constant 0 : index
        %c0_19 = arith.constant 0 : index
        %34 = vector.load %arg11[%c0_18, %c0_19] : memref<3x32xf32, #tpu.memory_space<vmem>>, vector<1x32xf32>
        tpu.vector_store %arg11[%c0_18, %c0_19], %27 {strides = array<i32>} : memref<3x32xf32, #tpu.memory_space<vmem>>, vector<1x32xf32>,
        %c1 = arith.constant 1 : index
        %c0_20 = arith.constant 0 : index
        %35 = vector.load %arg11[%c1, %c0_20] : memref<3x32xf32, #tpu.memory_space<vmem>>, vector<1x32xf32>
        tpu.vector_store %arg11[%c1, %c0_20], %19 {strides = array<i32>} : memref<3x32xf32, #tpu.memory_space<vmem>>, vector<1x32xf32>,
        %c2 = arith.constant 2 : index
        %c0_21 = arith.constant 0 : index
        %36 = vector.load %arg11[%c2, %c0_21] : memref<3x32xf32, #tpu.memory_space<vmem>>, vector<1x32xf32>
        tpu.vector_store %arg11[%c2, %c0_21], %24 {strides = array<i32>} : memref<3x32xf32, #tpu.memory_space<vmem>>, vector<1x32xf32>,
      } else {
      }
      %c0_i32_16 = arith.constant 0 : i32
      %31 = arith.cmpi sgt, %arg1, %c0_i32_16 : i32
      %32 = arith.extui %31 : i1 to i32
      %c0_i32_17 = arith.constant 0 : i32
      %33 = arith.cmpi ne, %32, %c0_i32_17 : i32
      scf.if %33 {
        %c0_18 = arith.constant 0 : index
        %c0_19 = arith.constant 0 : index
        %34 = vector.load %arg11[%c0_18, %c0_19] : memref<3x32xf32, #tpu.memory_space<vmem>>, vector<1x32xf32>
        %c1 = arith.constant 1 : index
        %c0_20 = arith.constant 0 : index
        %35 = vector.load %arg11[%c1, %c0_20] : memref<3x32xf32, #tpu.memory_space<vmem>>, vector<1x32xf32>
        %c2 = arith.constant 2 : index
        %c0_21 = arith.constant 0 : index
        %36 = vector.load %arg11[%c2, %c0_21] : memref<3x32xf32, #tpu.memory_space<vmem>>, vector<1x32xf32>
        %37 = arith.addf %34, %27 : vector<1x32xf32>
        %38 = arith.subf %19, %35 : vector<1x32xf32>
        %c0_22 = arith.constant 0 : index
        %c0_23 = arith.constant 0 : index
        %39 = vector.load %arg11[%c0_22, %c0_23] : memref<3x32xf32, #tpu.memory_space<vmem>>, vector<1x32xf32>
        tpu.vector_store %arg11[%c0_22, %c0_23], %37 {strides = array<i32>} : memref<3x32xf32, #tpu.memory_space<vmem>>, vector<1x32xf32>,
        %40 = arith.divf %27, %37 : vector<1x32xf32>
        %41 = arith.mulf %38, %40 : vector<1x32xf32>
        %42 = arith.addf %35, %41 : vector<1x32xf32>
        %c1_24 = arith.constant 1 : index
        %c0_25 = arith.constant 0 : index
        %43 = vector.load %arg11[%c1_24, %c0_25] : memref<3x32xf32, #tpu.memory_space<vmem>>, vector<1x32xf32>
        tpu.vector_store %arg11[%c1_24, %c0_25], %42 {strides = array<i32>} : memref<3x32xf32, #tpu.memory_space<vmem>>, vector<1x32xf32>,
        %44 = arith.addf %36, %24 : vector<1x32xf32>
        %45 = arith.mulf %38, %38 : vector<1x32xf32>
        %46 = arith.mulf %34, %27 : vector<1x32xf32>
        %47 = arith.divf %46, %37 : vector<1x32xf32>
        %48 = arith.mulf %45, %47 : vector<1x32xf32>
        %49 = arith.addf %44, %48 : vector<1x32xf32>
        %c2_26 = arith.constant 2 : index
        %c0_27 = arith.constant 0 : index
        %50 = vector.load %arg11[%c2_26, %c0_27] : memref<3x32xf32, #tpu.memory_space<vmem>>, vector<1x32xf32>
        tpu.vector_store %arg11[%c2_26, %c0_27], %49 {strides = array<i32>} : memref<3x32xf32, #tpu.memory_space<vmem>>, vector<1x32xf32>,
      } else {
      }
    } else {
    }
    %c1_i32 = arith.constant 1 : i32
    %3 = arith.cmpi eq, %arg0, %c1_i32 : i32
    %4 = arith.extui %3 : i1 to i32
    %c0_i32_1 = arith.constant 0 : i32
    %5 = arith.cmpi ne, %4, %c0_i32_1 : i32
    scf.if %5 {
      %c1 = arith.constant 1 : index
      %c0 = arith.constant 0 : index
      %6 = vector.load %arg11[%c1, %c0] : memref<3x32xf32, #tpu.memory_space<vmem>>, vector<1x32xf32>
      %c2 = arith.constant 2 : index
      %c0_2 = arith.constant 0 : index
      %7 = vector.load %arg11[%c2, %c0_2] : memref<3x32xf32, #tpu.memory_space<vmem>>, vector<1x32xf32>
      %c0_3 = arith.constant 0 : index
      %c0_4 = arith.constant 0 : index
      %8 = vector.load %arg11[%c0_3, %c0_4] : memref<3x32xf32, #tpu.memory_space<vmem>>, vector<1x32xf32>
      %9 = arith.divf %7, %8 : vector<1x32xf32>
      %cst = arith.constant 9.99999974E-6 : f32
      %10 = vector.broadcast %cst : f32 to vector<1x32xf32>
      %11 = arith.addf %9, %10 : vector<1x32xf32>
      %12 = math.rsqrt %11 : vector<1x32xf32>
      %c0_5 = arith.constant 0 : index
      %c0_6 = arith.constant 0 : index
      %13 = vector.load %arg5[%c0_5, %c0_6] : memref<1x32xf32, #tpu.memory_space<vmem>>, vector<1x32xf32>
      %14 = arith.mulf %13, %12 : vector<1x32xf32>
      %c0_7 = arith.constant 0 : index
      %c0_8 = arith.constant 0 : index
      %15 = vector.load %arg6[%c0_7, %c0_8] : memref<1x32xf32, #tpu.memory_space<vmem>>, vector<1x32xf32>
      %16 = arith.mulf %6, %14 : vector<1x32xf32>
      %17 = arith.subf %15, %16 : vector<1x32xf32>
      %18 = arith.index_cast %arg1 : i32 to index
      %c0_9 = arith.constant 0 : index
      %c0_10 = arith.constant 0 : index
      %19 = vector.load %arg10[%18, %c0_9, %c0_10] : memref<1x16x32xf32, #tpu.memory_space<vmem>>, vector<1x16x32xf32>
      %20 = vector.shape_cast %19 : vector<1x16x32xf32> to vector<16x32xf32>
      %21 = vector.broadcast %14 : vector<1x32xf32> to vector<16x32xf32>
      %22 = arith.mulf %20, %21 : vector<16x32xf32>
      %23 = vector.broadcast %17 : vector<1x32xf32> to vector<16x32xf32>
      %24 = arith.addf %22, %23 : vector<16x32xf32>
      %cst_11 = arith.constant 0.000000e+00 : f32
      %25 = vector.broadcast %cst_11 : f32 to vector<16x32xf32>
      %26 = arith.cmpf oge, %24, %25 : vector<16x32xf32>
      %cst_12 = arith.constant 0.00999999977 : f32
      %27 = vector.broadcast %cst_12 : f32 to vector<16x32xf32>
      %28 = arith.mulf %27, %24 : vector<16x32xf32>
      %29 = arith.select %26, %24, %28 : vector<16x32xi1>, vector<16x32xf32>
      %c0_13 = arith.constant 0 : index
      %c0_14 = arith.constant 0 : index
      %30 = vector.load %arg8[%c0_13, %c0_14] : memref<32x1xf32, #tpu.memory_space<vmem>>, vector<32x1xf32>
      %cst_15 = arith.constant dense<0.000000e+00> : vector<16x1xf32>
      %31 = tpu.matmul %29, %30, %cst_15 {dimension_numbers = #tpu.dot_dimension_numbers<[1], [0], [0], [1], [0, 0, 1, 1], [], []>} : vector<16x32xf32>, vector<32x1xf32>, vector<16x1xf32> -> vector<16x1xf32>
      %c0_16 = arith.constant 0 : index
      %c0_17 = arith.constant 0 : index
      %32 = vector.load %arg7[%c0_16, %c0_17] : memref<16x1xf32, #tpu.memory_space<vmem>>, vector<16x1xf32>
      %33 = arith.addf %31, %32 : vector<16x1xf32>
      %cst_18 = arith.constant 0.000000e+00 : f32
      %34 = vector.broadcast %cst_18 : f32 to vector<16x1xf32>
      %35 = arith.cmpf oge, %33, %34 : vector<16x1xf32>
      %cst_19 = arith.constant 0.00999999977 : f32
      %36 = vector.broadcast %cst_19 : f32 to vector<16x1xf32>
      %37 = arith.mulf %36, %33 : vector<16x1xf32>
      %38 = arith.select %35, %33, %37 : vector<16x1xi1>, vector<16x1xf32>
      %c0_20 = arith.constant 0 : index
      %c0_21 = arith.constant 0 : index
      %39 = vector.load %arg9[%c0_20, %c0_21] : memref<16x1xf32, #tpu.memory_space<vmem>>, vector<16x1xf32>
      tpu.vector_store %arg9[%c0_20, %c0_21], %38 {strides = array<i32>} : memref<16x1xf32, #tpu.memory_space<vmem>>, vector<16x1xf32>,
    } else {
    }
    return
  }
  func.func @transform_0(%arg0: i32, %arg1: i32) -> (i32, i32) {
    %c1_i32 = arith.constant 1 : i32
    %0 = arith.subi %c1_i32, %arg0 : i32
    %1 = arith.muli %0, %arg1 : i32
    %c0_i32 = arith.constant 0 : i32
    %2 = arith.muli %arg0, %c0_i32 : i32
    %3 = arith.addi %1, %2 : i32
    %c0_i32_0 = arith.constant 0 : i32
    %c0_i32_1 = arith.constant 0 : i32
    return %3, %c0_i32_0 : i32, i32
  }
  func.func @transform_1(%arg0: i32, %arg1: i32) -> (i32, i32) {
    %c0_i32 = arith.constant 0 : i32
    %c0_i32_0 = arith.constant 0 : i32
    %c0_i32_1 = arith.constant 0 : i32
    return %c0_i32, %c0_i32_0 : i32, i32
  }
  func.func @transform_2(%arg0: i32, %arg1: i32) -> (i32, i32) {
    %c0_i32 = arith.constant 0 : i32
    %c0_i32_0 = arith.constant 0 : i32
    %c0_i32_1 = arith.constant 0 : i32
    return %c0_i32, %c0_i32_0 : i32, i32
  }
  func.func @transform_3(%arg0: i32, %arg1: i32) -> (i32, i32) {
    %c0_i32 = arith.constant 0 : i32
    %c0_i32_0 = arith.constant 0 : i32
    %c0_i32_1 = arith.constant 0 : i32
    return %c0_i32, %c0_i32_0 : i32, i32
  }
  func.func @transform_4(%arg0: i32, %arg1: i32) -> (i32, i32) {
    %c0_i32 = arith.constant 0 : i32
    %c0_i32_0 = arith.constant 0 : i32
    %c0_i32_1 = arith.constant 0 : i32
    return %c0_i32, %c0_i32_0 : i32, i32
  }
  func.func @transform_5(%arg0: i32, %arg1: i32) -> (i32, i32) {
    %c0_i32 = arith.constant 0 : i32
    %c0_i32_0 = arith.constant 0 : i32
    %c0_i32_1 = arith.constant 0 : i32
    return %c0_i32, %c0_i32_0 : i32, i32
  }
  func.func @transform_6(%arg0: i32, %arg1: i32) -> (i32, i32) {
    %c0_i32 = arith.constant 0 : i32
    %c0_i32_0 = arith.constant 0 : i32
    %c0_i32_1 = arith.constant 0 : i32
    return %c0_i32, %c0_i32_0 : i32, i32
  }
  func.func @transform_7(%arg0: i32, %arg1: i32) -> (i32, i32) {
    %0 = arith.muli %arg0, %arg1 : i32
    %c0_i32 = arith.constant 0 : i32
    %c0_i32_0 = arith.constant 0 : i32
    return %0, %c0_i32 : i32, i32
  }
}

</mosaic_0001>

<llo_original>
// kernel: tpu_custom_call.1
$region0: #{tpu_custom_call.1}
  #allocation0 [shape = 'u32[]', space=smem, size = 0x4, offset = 0x4, fixed_abs, tag = 'smem constant byte address 0x4 - core index']
  #allocation1 [shape = 'u32[144,128]{1,0:T(1,128)}', space=vmem, size = 0x12000, scoped, tag = 'internal scratch']
  #allocation2 [shape = 'f32[1,16,32]{2,1,0:T(8,128)}', space=vmem, size = 0x2000, scoped, tag = 'scratch operand']
  #allocation3 [shape = 'f32[3,32]{1,0:T(4,128)}', space=vmem, size = 0x800, scoped, tag = 'scratch operand']
  %s0 = inlined_call_operand.vmem [shape: f32[16,80], index: 0, kind: input, shape index: {}]
  %s1 = inlined_call_operand.vmem [shape: f32[80,32], index: 1, kind: input, shape index: {}]
  %s2 = inlined_call_operand.vmem [shape: f32[1,32], index: 2, kind: input, shape index: {}]
  %s3 = inlined_call_operand.vmem [shape: f32[1,32], index: 3, kind: input, shape index: {}]
  %s4 = inlined_call_operand.vmem [shape: f32[1,32], index: 4, kind: input, shape index: {}]
  %s5 = inlined_call_operand.vmem [shape: f32[16,1], index: 5, kind: input, shape index: {}]
  %s6 = inlined_call_operand.vmem [shape: f32[32,1], index: 6, kind: input, shape index: {}]
  %s7 = inlined_call_operand.vmem [shape: f32[16,1], index: 7, kind: output, shape index: {}]
  %s8 = sld [smem:[#allocation0]]
  $region77: #{tpu_custom_call.1} parent=0
    _
  %s10 = ssub.s32 1, %s8
  %s11 = scalar_select 0, %s10, %s8
  loop: start=0, step=1, limit=4
  $region2: #{tpu_custom_call.1} parent=0 // loop_pre_header
    _
  $region3: #{tpu_custom_call.1} parent=0 // loop_header
    %s13 = sphi 0, %s17
    %p14 = scmp.ge.s32.totalorder %s13, 4
    %s20 = sphi 0, %s32
    %s21 = sphi 0, %s28
    %s22 = sphi 0, %s20
    %s23 = sphi 0, %s21
    %s24 = sphi 0, %s22
    %s25 = sphi 0, %s23
    %s39 = sphi 0, %s41
    %s42 = sphi 0, %s39
    %s43 = sphi 0, %s42
    %s59 = sphi 0, %s43
    %s63 = sphi 0, %s63
    %s65 = sphi 0, %s63
    %s66 = sphi 0, %s65
    %s80 = sphi 0, %s66
    %s84 = sphi 0, %s84
    %s86 = sphi 0, %s84
    %s87 = sphi 0, %s86
    %s101 = sphi 0, %s87
    %s105 = sphi 0, %s105
    %s107 = sphi 0, %s105
    %s108 = sphi 0, %s107
    %s122 = sphi 0, %s108
    %s126 = sphi 0, %s126
    %s128 = sphi 0, %s126
    %s129 = sphi 0, %s128
    %s143 = sphi 0, %s129
    %s147 = sphi 0, %s147
    %s149 = sphi 0, %s147
    %s150 = sphi 0, %s149
    %s164 = sphi 0, %s150
    %s168 = sphi 0, %s168
    %s170 = sphi 0, %s168
    %s171 = sphi 0, %s170
    %s185 = sphi 0, %s171
    %s193 = sphi 0, %s195
    %s196 = sphi 0, %s193
    %s197 = sphi 0, %s196
    %s213 = sphi 0, %s197
  $region4: #{tpu_custom_call.1} parent=0 // loop_header_branch
    %16 = sbr.rel (%p14) target = $region8
  $region5: #{tpu_custom_call.1} parent=0 // loop_body
    %s18 = ssub.s32 %s13, 1
    %s19 = ssub.s32 %s13, 2
    %s26 = sadd.s32 1, %s21
    %p27 = scmp.ge.s32.totalorder %s26, 1
    %s28 = scalar_select %p27, 0, %s26
    %s29 = sadd.s32 1, %s20
    %s30 = scalar_select %p27, %s29, %s20
    %p31 = scmp.ge.s32.totalorder %s30, 2
    %s32 = scalar_select %p31, 0, %s30
    %s33 = ssub.s32 1, %s20
    %s34 = smul.u32 %s33, %s21
    %s35 = ssub.s32 1, %s32
    %s36 = smul.u32 %s35, %s28
    %s37 = ssub.s32 %s34, %s36
    %p38 = scmp.eq.s32.totalorder %s37, 0
    %s40 = sadd.s32 %s39, 1
    %s41 = scalar_select %p38, %s39, %s40
    %p44 = pneg %p38
    %p45 = scmp.eq.s32.totalorder %s13, 1
    %p46 = por %p44, %p45
    %p47 = scmp.ne.s32.totalorder %s39, %s42
    %p48 = scmp.eq.s32.totalorder %s13, 0
    %p49 = por %p47, %p48
    %p50 = scmp.ne.s32.totalorder %s39, %s42
    %p51 = scmp.eq.s32.totalorder %s18, 1
    %p52 = por %p50, %p51
    %p53 = scmp.ne.s32.totalorder %s42, %s43
    %p54 = scmp.eq.s32.totalorder %s18, 0
    %p55 = por %p53, %p54
    %p56 = scmp.ne.s32.totalorder %s42, %s43
    %p57 = scmp.eq.s32.totalorder %s19, 1
    %p58 = por %p56, %p57
    %p60 = scmp.ne.s32.totalorder %s43, %s59
    %p61 = scmp.eq.s32.totalorder %s19, 0
    %p62 = por %p60, %p61
    %s64 = sadd.s32 %s63, 1
    %p67 = scmp.eq.s32.totalorder %s13, 1
    %p68 = scmp.ne.s32.totalorder %s63, %s65
    %p69 = scmp.eq.s32.totalorder %s13, 0
    %p70 = por %p68, %p69
    %p71 = scmp.ne.s32.totalorder %s63, %s65
    %p72 = scmp.eq.s32.totalorder %s18, 1
    %p73 = por %p71, %p72
    %p74 = scmp.ne.s32.totalorder %s65, %s66
    %p75 = scmp.eq.s32.totalorder %s18, 0
    %p76 = por %p74, %p75
    %p77 = scmp.ne.s32.totalorder %s65, %s66
    %p78 = scmp.eq.s32.totalorder %s19, 1
    %p79 = por %p77, %p78
    %p81 = scmp.ne.s32.totalorder %s66, %s80
    %p82 = scmp.eq.s32.totalorder %s19, 0
    %p83 = por %p81, %p82
    %s85 = sadd.s32 %s84, 1
    %p88 = scmp.eq.s32.totalorder %s13, 1
    %p89 = scmp.ne.s32.totalorder %s84, %s86
    %p90 = scmp.eq.s32.totalorder %s13, 0
    %p91 = por %p89, %p90
    %p92 = scmp.ne.s32.totalorder %s84, %s86
    %p93 = scmp.eq.s32.totalorder %s18, 1
    %p94 = por %p92, %p93
    %p95 = scmp.ne.s32.totalorder %s86, %s87
    %p96 = scmp.eq.s32.totalorder %s18, 0
    %p97 = por %p95, %p96
    %p98 = scmp.ne.s32.totalorder %s86, %s87
    %p99 = scmp.eq.s32.totalorder %s19, 1
    %p100 = por %p98, %p99
    %p102 = scmp.ne.s32.totalorder %s87, %s101
    %p103 = scmp.eq.s32.totalorder %s19, 0
    %p104 = por %p102, %p103
    %s106 = sadd.s32 %s105, 1
    %p109 = scmp.eq.s32.totalorder %s13, 1
    %p110 = scmp.ne.s32.totalorder %s105, %s107
    %p111 = scmp.eq.s32.totalorder %s13, 0
    %p112 = por %p110, %p111
    %p113 = scmp.ne.s32.totalorder %s105, %s107
    %p114 = scmp.eq.s32.totalorder %s18, 1
    %p115 = por %p113, %p114
    %p116 = scmp.ne.s32.totalorder %s107, %s108
    %p117 = scmp.eq.s32.totalorder %s18, 0
    %p118 = por %p116, %p117
    %p119 = scmp.ne.s32.totalorder %s107, %s108
    %p120 = scmp.eq.s32.totalorder %s19, 1
    %p121 = por %p119, %p120
    %p123 = scmp.ne.s32.totalorder %s108, %s122
    %p124 = scmp.eq.s32.totalorder %s19, 0
    %p125 = por %p123, %p124
    %s127 = sadd.s32 %s126, 1
    %p130 = scmp.eq.s32.totalorder %s13, 1
    %p131 = scmp.ne.s32.totalorder %s126, %s128
    %p132 = scmp.eq.s32.totalorder %s13, 0
    %p133 = por %p131, %p132
    %p134 = scmp.ne.s32.totalorder %s126, %s128
    %p135 = scmp.eq.s32.totalorder %s18, 1
    %p136 = por %p134, %p135
    %p137 = scmp.ne.s32.totalorder %s128, %s129
    %p138 = scmp.eq.s32.totalorder %s18, 0
    %p139 = por %p137, %p138
    %p140 = scmp.ne.s32.totalorder %s128, %s129
    %p141 = scmp.eq.s32.totalorder %s19, 1
    %p142 = por %p140, %p141
    %p144 = scmp.ne.s32.totalorder %s129, %s143
    %p145 = scmp.eq.s32.totalorder %s19, 0
    %p146 = por %p144, %p145
    %s148 = sadd.s32 %s147, 1
    %p151 = scmp.eq.s32.totalorder %s13, 1
    %p152 = scmp.ne.s32.totalorder %s147, %s149
    %p153 = scmp.eq.s32.totalorder %s13, 0
    %p154 = por %p152, %p153
    %p155 = scmp.ne.s32.totalorder %s147, %s149
    %p156 = scmp.eq.s32.totalorder %s18, 1
    %p157 = por %p155, %p156
    %p158 = scmp.ne.s32.totalorder %s149, %s150
    %p159 = scmp.eq.s32.totalorder %s18, 0
    %p160 = por %p158, %p159
    %p161 = scmp.ne.s32.totalorder %s149, %s150
    %p162 = scmp.eq.s32.totalorder %s19, 1
    %p163 = por %p161, %p162
    %p165 = scmp.ne.s32.totalorder %s150, %s164
    %p166 = scmp.eq.s32.totalorder %s19, 0
    %p167 = por %p165, %p166
    %s169 = sadd.s32 %s168, 1
    %p172 = scmp.eq.s32.totalorder %s13, 1
    %p173 = scmp.ne.s32.totalorder %s168, %s170
    %p174 = scmp.eq.s32.totalorder %s13, 0
    %p175 = por %p173, %p174
    %p176 = scmp.ne.s32.totalorder %s168, %s170
    %p177 = scmp.eq.s32.totalorder %s18, 1
    %p178 = por %p176, %p177
    %p179 = scmp.ne.s32.totalorder %s170, %s171
    %p180 = scmp.eq.s32.totalorder %s18, 0
    %p181 = por %p179, %p180
    %p182 = scmp.ne.s32.totalorder %s170, %s171
    %p183 = scmp.eq.s32.totalorder %s19, 1
    %p184 = por %p182, %p183
    %p186 = scmp.ne.s32.totalorder %s171, %s185
    %p187 = scmp.eq.s32.totalorder %s19, 0
    %p188 = por %p186, %p187
    %s189 = smul.u32 %s20, %s21
    %s190 = smul.u32 %s32, %s28
    %s191 = ssub.s32 %s189, %s190
    %p192 = scmp.eq.s32.totalorder %s191, 0
    %s194 = sadd.s32 %s193, 1
    %s195 = scalar_select %p192, %s193, %s194
    %p198 = pneg %p192
    %p199 = scmp.eq.s32.totalorder %s13, 1
    %p200 = por %p198, %p199
    %p201 = scmp.ne.s32.totalorder %s193, %s196
    %p202 = scmp.eq.s32.totalorder %s13, 0
    %p203 = por %p201, %p202
    %p204 = scmp.ne.s32.totalorder %s193, %s196
    %p205 = scmp.eq.s32.totalorder %s18, 1
    %p206 = por %p204, %p205
    %p207 = scmp.ne.s32.totalorder %s196, %s197
    %p208 = scmp.eq.s32.totalorder %s18, 0
    %p209 = por %p207, %p208
    %p210 = scmp.ne.s32.totalorder %s196, %s197
    %p211 = scmp.eq.s32.totalorder %s19, 1
    %p212 = por %p210, %p211
    %p214 = scmp.ne.s32.totalorder %s197, %s213
    %p215 = scmp.eq.s32.totalorder %s19, 0
    %p216 = por %p214, %p215
    %p217 = scmp.le.s32.totalorder 1, %s13
    %p218 = scmp.lt.s32.totalorder %s13, 3
    %p219 = pnand %p217, %p218
    %p220 = pneg %p219
    // Predicated region
    $region9: #{tpu_custom_call.1} parent=5 // pred_check
      _
    $region10: #{tpu_custom_call.1} parent=5 // pred_check_branch
      %222 = sbr.rel (%p219) target = $region12
    $region11: #{tpu_custom_call.1} parent=5 // pred_region
      %s223 = ssub.s32 %s13, 1
      // Predicated region
      $region13: #{tpu_custom_call.1} parent=11 // pred_check
        %p224 = pneg %p76
      $region14: #{tpu_custom_call.1} parent=11 // pred_check_branch
        %226 = sbr.rel (%p224) target = $region16
      $region15: #{tpu_custom_call.1} parent=11 // pred_region
        _
      $region16: #{tpu_custom_call.1} parent=11 // pred_fallthru
        _
      // Predicated region
      $region17: #{tpu_custom_call.1} parent=11 // pred_check
        %p227 = pneg %p97
      $region18: #{tpu_custom_call.1} parent=11 // pred_check_branch
        %229 = sbr.rel (%p227) target = $region20
      $region19: #{tpu_custom_call.1} parent=11 // pred_region
        _
      $region20: #{tpu_custom_call.1} parent=11 // pred_fallthru
        _
      // Predicated region
      $region21: #{tpu_custom_call.1} parent=11 // pred_check
        %p230 = pneg %p118
      $region22: #{tpu_custom_call.1} parent=11 // pred_check_branch
        %232 = sbr.rel (%p230) target = $region24
      $region23: #{tpu_custom_call.1} parent=11 // pred_region
        _
      $region24: #{tpu_custom_call.1} parent=11 // pred_fallthru
        _
      // Predicated region
      $region25: #{tpu_custom_call.1} parent=11 // pred_check
        %p233 = pneg %p139
      $region26: #{tpu_custom_call.1} parent=11 // pred_check_branch
        %235 = sbr.rel (%p233) target = $region28
      $region27: #{tpu_custom_call.1} parent=11 // pred_region
        _
      $region28: #{tpu_custom_call.1} parent=11 // pred_fallthru
        _
      // Predicated region
      $region29: #{tpu_custom_call.1} parent=11 // pred_check
        %p236 = pneg %p160
      $region30: #{tpu_custom_call.1} parent=11 // pred_check_branch
        %238 = sbr.rel (%p236) target = $region32
      $region31: #{tpu_custom_call.1} parent=11 // pred_region
        _
      $region32: #{tpu_custom_call.1} parent=11 // pred_fallthru
        _
      // Predicated region
      $region33: #{tpu_custom_call.1} parent=11 // pred_check
        %p239 = pneg %p181
      $region34: #{tpu_custom_call.1} parent=11 // pred_check_branch
        %241 = sbr.rel (%p239) target = $region36
      $region35: #{tpu_custom_call.1} parent=11 // pred_region
        _
      $region36: #{tpu_custom_call.1} parent=11 // pred_fallthru
        _
    $region12: #{tpu_custom_call.1} parent=5 // pred_fallthru
      _
    %p242 = scmp.lt.s32.totalorder %s13, 2
    // Predicated region
    $region37: #{tpu_custom_call.1} parent=5 // pred_check
      %p243 = pneg %p242
    $region38: #{tpu_custom_call.1} parent=5 // pred_check_branch
      %245 = sbr.rel (%p243) target = $region40
    $region39: #{tpu_custom_call.1} parent=5 // pred_region
      // Predicated region
      $region41: #{tpu_custom_call.1} parent=39 // pred_check
        %p246 = pneg %p49
      $region42: #{tpu_custom_call.1} parent=39 // pred_check_branch
        %248 = sbr.rel (%p246) target = $region44
      $region43: #{tpu_custom_call.1} parent=39 // pred_region
        %s249 = ssub.s32 1, %s20
        %s250 = smul.u32 %s249, %s21
        %s251 = smul.u32 2, %s250
        %p252 = scmp.lt.s32.totalorder %s251, 1
        %s253 = scalar_select %p252, %s251, 1
        %s254 = smul.addr %s253, 8
        %s255 = scalar_lea.vmem %s0, %s254
        %s256 = ssub.s32 1, %s20
        %s257 = smul.u32 %s256, %s21
        %s258 = smul.u32 2, %s257
      $region44: #{tpu_custom_call.1} parent=39 // pred_fallthru
        _
    $region40: #{tpu_custom_call.1} parent=5 // pred_fallthru
      _
    %p259 = scmp.le.s32.totalorder 1, %s13
    %p260 = scmp.lt.s32.totalorder %s13, 3
    %p261 = pnand %p259, %p260
    %p262 = pneg %p261
    // Predicated region
    $region45: #{tpu_custom_call.1} parent=5 // pred_check
      _
    $region46: #{tpu_custom_call.1} parent=5 // pred_check_branch
      %264 = sbr.rel (%p261) target = $region48
    $region47: #{tpu_custom_call.1} parent=5 // pred_region
      %s265 = ssub.s32 %s13, 1
      %s266 = ssub.s32 1, %s22
      %s267 = smul.u32 %s266, %s23
      %s268 = smul.u32 2, %s267
      %p269 = scmp.lt.s32.totalorder %s268, 1
      %s270 = scalar_select %p269, %s268, 1
      %s271 = smul.addr %s270, 8
      %s272 = scalar_lea.vmem %s0, %s271
      %p273 = pneg %p55
      %p274 = pneg %p52
      %p275 = pneg %p76
      %p276 = pneg %p73
      %p277 = pneg %p97
      %p278 = pneg %p94
      %p279 = pneg %p118
      %p280 = pneg %p115
      %p281 = pneg %p139
      %p282 = pneg %p136
      %p283 = pneg %p160
      %p284 = pneg %p157
      %p285 = pneg %p181
      %p286 = pneg %p178
      %p287 = pneg %p209
      %p288 = pneg %p206
      %s289 = smul.u32 %s22, %s23
      %s290 = smul.u32 2, %s289
      %p291 = scmp.lt.s32.totalorder %s290, 1
      %s292 = scalar_select %p291, %s290, 1
      %s293 = smul.addr %s292, 8
      %s294 = scalar_lea.vmem %s7, %s293
      %s295 = ssub.s32 1, %s22
      %s296 = smul.u32 %s295, %s23
      %s297 = smul.u32 2, %s296
      %p298 = scmp.lt.s32.totalorder %s297, 1
      %s299 = scalar_select %p298, %s297, 1
      %s300 = smul.addr %s299, 8
      %s301 = scalar_lea.vmem %s0, %s300
      %s302 = ssub.s32 1, %s22
      %s303 = smul.u32 %s302, %s23
      %s304 = smul.u32 2, %s303
      %s305 = smul.u32 %s22, %s23
      %s306 = smul.u32 2, %s305
      %p307 = scmp.lt.s32.totalorder %s306, 1
      %s308 = scalar_select %p307, %s306, 1
      %s309 = smul.addr %s308, 8
      %s310 = scalar_lea.vmem %s7, %s309
      %s311 = smul.u32 %s22, %s23
      %s312 = smul.u32 2, %s311
      %p313 = scmp.eq.s32.totalorder %s22, 0
      // Predicated region
      $region49: #{tpu_custom_call.1} parent=47 // pred_check
        %p314 = pneg %p313
      $region50: #{tpu_custom_call.1} parent=47 // pred_check_branch
        %316 = sbr.rel (%p314) target = $region52
      $region51: #{tpu_custom_call.1} parent=47 // pred_region
        %v317 = vld [vmem:[%s301] sm:$0xff]
        %v318 = vld [vmem:[%s301 + $0x8] sm:$0xff]
        %v319 = vld [vmem:[%s1] sm:$0xff]
        %v320 = vld [vmem:[%s1 + $0x8] sm:$0xff]
        %v321 = vld [vmem:[%s1 + $0x10] sm:$0xff]
        %v322 = vld [vmem:[%s1 + $0x18] sm:$0xff]
        %v323 = vld [vmem:[%s1 + $0x20] sm:$0xff]
        %v324 = vld [vmem:[%s1 + $0x28] sm:$0xff]
        %v325 = vld [vmem:[%s1 + $0x30] sm:$0xff]
        %v326 = vld [vmem:[%s1 + $0x38] sm:$0xff]
        %v327 = vld [vmem:[%s1 + $0x40] sm:$0xff]
        %v328 = vld [vmem:[%s1 + $0x48] sm:$0xff]
        %v329 = vld [vmem:[%s2] sm:$0x1]
        %v331 = vlaneseq
        %v332 = vshrl.u32 %v331, 7
        %v333 = vsub.s32 0, %v332
        %v334 = vrot.slane %v329, %v333
        %vm336 = vcmask 654336
        %v338 = vsel %vm336, %v317, 0
        %v341 = vsel %vm336, %v318, 0
        %343 = vmatprep.subr.mxu0 0.0
        %344 = vmatpush1.msra.mxu0 %v319
        %345 = vmatprep.subr.mxu0 0.0
        %346 = vmatpush1.msra.mxu0 %v320
        %347 = vmatprep.subr.mxu0 0.0
        %348 = vmatpush1.msra.mxu0 %v321
        %349 = vmatprep.subr.mxu0 0.0
        %350 = vmatpush1.msra.mxu0 %v322
        %351 = vmatprep.subr.mxu0 0.0
        %352 = vmatpush1.msra.mxu0 %v323
        %353 = vmatprep.subr.mxu0 0.0
        %354 = vmatpush1.msra.mxu0 %v324
        %355 = vmatprep.subr.mxu0 0.0
        %356 = vmatpush1.msra.mxu0 %v325
        %357 = vmatprep.subr.mxu0 0.0
        %358 = vmatpush1.msra.mxu0 %v326
        %359 = vmatprep.subr.mxu0 0.0
        %360 = vmatpush1.msra.mxu0 %v327
        %361 = vmatprep.subr.mxu0 0.0
        %362 = vmatpush1.msra.mxu0 %v328
        %363 = vmatprep.subr.mxu0 0.0
        %364 = vmatpush1.msra.mxu0 0.0
        %365 = vmatprep.subr.mxu0 0.0
        %366 = vmatpush1.msra.mxu0 0.0
        %367 = vmatprep.subr.mxu0 0.0
        %368 = vmatpush1.msra.mxu0 0.0
        %369 = vmatprep.subr.mxu0 0.0
        %370 = vmatpush1.msra.mxu0 0.0
        %371 = vmatprep.subr.mxu0 0.0
        %372 = vmatpush1.msra.mxu0 0.0
        %373 = vmatprep.subr.mxu0 0.0
        %374 = vmatpush1.msra.mxu0 0.0
        %375 = vmatprep.subr.mxu0 0.0
        %376 = vmatpush1.msra.mxu0 0.0
        %377 = vmatprep.subr.mxu0 0.0
        %378 = vmatpush1.msra.mxu0 0.0
        %379 = vmatprep.subr.mxu0 0.0
        %380 = vmatpush1.msra.mxu0 0.0
        %381 = vmatprep.subr.mxu0 0.0
        %382 = vmatpush1.msra.mxu0 0.0
        %383 = vmatprep.subr.mxu0 0.0
        %384 = vmatpush1.msra.mxu0 0.0
        %385 = vmatprep.subr.mxu0 0.0
        %386 = vmatpush1.msra.mxu0 0.0
        %387 = vmatprep.subr.mxu0 0.0
        %388 = vmatpush1.msra.mxu0 0.0
        %389 = vmatprep.subr.mxu0 0.0
        %390 = vmatpush1.msra.mxu0 0.0
        %391 = vmatprep.subr.mxu0 0.0
        %392 = vmatpush1.msra.mxu0 0.0
        %393 = vmatprep.subr.mxu0 0.0
        %394 = vmatpush1.msra.mxu0 0.0
        %395 = vmatprep.subr.mxu0 0.0
        %396 = vmatpush1.msra.mxu0 0.0
        %397 = vmatprep.subr.mxu0 0.0
        %398 = vmatpush1.msra.mxu0 0.0
        %399 = vmatprep.subr.mxu0 0.0
        %400 = vmatpush1.msra.mxu0 0.0
        %401 = vmatprep.subr.mxu0 0.0
        %402 = vmatpush1.msra.mxu0 0.0
        %403 = vmatprep.subr.mxu0 0.0
        %404 = vmatpush1.msra.mxu0 0.0
        %405 = vmatprep.subr.mxu0 0.0
        %406 = vmatpush1.msra.mxu0 0.0
        %407 = vmatprep.mubr.f32.mxu0 0.0
        %408 = vmatmul.mubr.f32.gmra.mrb[0].mxu0 %v338
        %v409 = vpop.f32.mrb[0].mxu0
        %v410 = vadd.f32 %v334, %v409
        %v411 = vpop.f32.mrb[0].mxu0
        %412 = vmatprep.mubr.f32.mxu0 0.0
        %413 = vmatmul.mubr.f32.gmra.mrb[0].mxu0 %v341
        %v414 = vpop.f32.mrb[0].mxu0
        %v415 = vadd.f32 %v334, %v414
        %v416 = vpop.f32.mrb[0].mxu0
        %417 = vdwg.mxu0
        %s418 = smul.u32 %s23, 16
        %s419 = scalar_lea.vmem [#allocation2], %s418
        %vm420 = vcmask 261120
        %421 = vst.msk [vmem:[%s419] sm:$0xff] %vm420, %v410
        %422 = vst.msk [vmem:[%s419 + $0x8] sm:$0xff] %vm420, %v415
        %v423 = vsel %vm420, %v410, 0.0
        %v424 = vsel %vm420, %v415, 0.0
        %v425 = vadd.f32 %v423, %v424
        %v426 = vrot.slane %v425, 4
        %v427 = vadd.f32 %v425, %v426
        %v428 = vrot.slane %v427, 2
        %v429 = vadd.f32 %v427, %v428
        %v430 = vrot.slane %v429, 1
        %v431 = vadd.f32 %v429, %v430
        %v432 = vrcp.pop 16.0
        %v433 = vmul.f32 %v431, %v432
        %v434 = vsub.f32 %v410, %v433
        %v435 = vsub.f32 %v415, %v433
        %v436 = vmul.f32 %v434, %v434
        %v437 = vmul.f32 %v435, %v435
        %v438 = vsel %vm420, %v436, 0.0
        %v439 = vsel %vm420, %v437, 0.0
        %v440 = vadd.f32 %v438, %v439
        %v441 = vrot.slane %v440, 4
        %v442 = vadd.f32 %v440, %v441
        %v443 = vrot.slane %v442, 2
        %v444 = vadd.f32 %v442, %v443
        %v445 = vrot.slane %v444, 1
        %v446 = vadd.f32 %v444, %v445
        %p447 = scmp.eq.s32.totalorder %s23, 0
        // Predicated region
        $region53: #{tpu_custom_call.1} parent=51 // pred_check
          %p448 = pneg %p447
        $region54: #{tpu_custom_call.1} parent=51 // pred_check_branch
          %450 = sbr.rel (%p448) target = $region56
        $region55: #{tpu_custom_call.1} parent=51 // pred_region
          %vm451 = vcmask 253952
          %452 = vst.msk [vmem:[#allocation3] sm:$0x1] %vm451, 16.0
          %453 = vst.msk [vmem:[#allocation3 + $0x1] sm:$0x1] %vm451, %v433
          %454 = vst.msk [vmem:[#allocation3 + $0x2] sm:$0x1] %vm451, %v446
        $region56: #{tpu_custom_call.1} parent=51 // pred_fallthru
          _
        %p455 = scmp.gt.s32.totalorder %s23, 0
        // Predicated region
        $region57: #{tpu_custom_call.1} parent=51 // pred_check
          %p456 = pneg %p455
        $region58: #{tpu_custom_call.1} parent=51 // pred_check_branch
          %458 = sbr.rel (%p456) target = $region60
        $region59: #{tpu_custom_call.1} parent=51 // pred_region
          %v459 = vld [vmem:[#allocation3] sm:$0x1]
          %v460 = vld [vmem:[#allocation3 + $0x1] sm:$0x1]
          %v461 = vld [vmem:[#allocation3 + $0x2] sm:$0x1]
          %v462 = vadd.f32 %v459, 16.0
          %v463 = vsub.f32 %v433, %v460
          %vm464 = vcmask 253952
          %465 = vst.msk [vmem:[#allocation3] sm:$0x1] %vm464, %v462
          %v466 = vrcp.pop %v462
          %v467 = vmul.f32 16.0, %v466
          %v468 = vmul.f32 %v463, %v467
          %v469 = vadd.f32 %v460, %v468
          %470 = vst.msk [vmem:[#allocation3 + $0x1] sm:$0x1] %vm464, %v469
          %v471 = vadd.f32 %v461, %v446
          %v472 = vmul.f32 %v463, %v463
          %v473 = vmul.f32 %v459, 16.0
          %v474 = vmul.f32 %v473, %v466
          %v475 = vmul.f32 %v472, %v474
          %v476 = vadd.f32 %v471, %v475
          %477 = vst.msk [vmem:[#allocation3 + $0x2] sm:$0x1] %vm464, %v476
        $region60: #{tpu_custom_call.1} parent=51 // pred_fallthru
          _
      $region52: #{tpu_custom_call.1} parent=47 // pred_fallthru
        _
      %p478 = scmp.eq.s32.totalorder %s22, 1
      // Predicated region
      $region61: #{tpu_custom_call.1} parent=47 // pred_check
        %p479 = pneg %p478
      $region62: #{tpu_custom_call.1} parent=47 // pred_check_branch
        %481 = sbr.rel (%p479) target = $region64
      $region63: #{tpu_custom_call.1} parent=47 // pred_region
        %v482 = vld [vmem:[#allocation3 + $0x1] sm:$0x1]
        %v483 = vld [vmem:[#allocation3 + $0x2] sm:$0x1]
        %v484 = vld [vmem:[#allocation3] sm:$0x1]
        %v485 = vrcp.pop %v484
        %v486 = vmul.f32 %v483, %v485
        %v487 = vadd.f32 %v486, 1e-05
        %v488 = vrsqrt.pop %v487
        %v489 = vld [vmem:[%s3] sm:$0x1]
        %v490 = vmul.f32 %v489, %v488
        %v491 = vld [vmem:[%s4] sm:$0x1]
        %v492 = vmul.f32 %v482, %v490
        %v493 = vsub.f32 %v491, %v492
        %s494 = smul.u32 %s23, 16
        %s495 = scalar_lea.vmem [#allocation2], %s494
        %v496 = vld [vmem:[%s495] sm:$0xff]
        %v497 = vld [vmem:[%s495 + $0x8] sm:$0xff]
        %v499 = vlaneseq
        %v500 = vshrl.u32 %v499, 7
        %v501 = vsub.s32 0, %v500
        %v502 = vrot.slane %v490, %v501
        %v504 = vmul.f32 %v496, %v502
        %v505 = vmul.f32 %v497, %v502
        %v507 = vlaneseq
        %v508 = vshrl.u32 %v507, 7
        %v509 = vsub.s32 0, %v508
        %v510 = vrot.slane %v493, %v509
        %v512 = vadd.f32 %v504, %v510
        %v513 = vadd.f32 %v505, %v510
        %vm514 = vcmp.ge.f32.partialorder %v512, 0.0
        %vm515 = vcmp.ge.f32.partialorder %v513, 0.0
        %v516 = vmul.f32 %v512, 0.01
        %v517 = vmul.f32 %v513, 0.01
        %v518 = vsel %vm514, %v512, %v516
        %v519 = vsel %vm515, %v513, %v517
        %v520 = vld [vmem:[%s6] sm:$0xff]
        %v521 = vld [vmem:[%s6 + $0x8] sm:$0xff]
        %v522 = vld [vmem:[%s6 + $0x10] sm:$0xff]
        %v523 = vld [vmem:[%s6 + $0x18] sm:$0xff]
        %v524 = vld [vmem:[%s5] sm:$0xff]
        %v525 = vld [vmem:[%s5 + $0x8] sm:$0xff]
        %vm526 = vcmask 261120
        %v528 = vsel %vm526, %v518, 0
        %v531 = vsel %vm526, %v519, 0
        %533 = vmatprep.subr.mxu0 0.0
        %534 = vmatpush1.msra.mxu0 %v520
        %535 = vmatprep.subr.mxu0 0.0
        %536 = vmatpush1.msra.mxu0 %v521
        %537 = vmatprep.subr.mxu0 0.0
        %538 = vmatpush1.msra.mxu0 %v522
        %539 = vmatprep.subr.mxu0 0.0
        %540 = vmatpush1.msra.mxu0 %v523
        %541 = vmatprep.subr.mxu0 0.0
        %542 = vmatpush1.msra.mxu0 0.0
        %543 = vmatprep.subr.mxu0 0.0
        %544 = vmatpush1.msra.mxu0 0.0
        %545 = vmatprep.subr.mxu0 0.0
        %546 = vmatpush1.msra.mxu0 0.0
        %547 = vmatprep.subr.mxu0 0.0
        %548 = vmatpush1.msra.mxu0 0.0
        %549 = vmatprep.subr.mxu0 0.0
        %550 = vmatpush1.msra.mxu0 0.0
        %551 = vmatprep.subr.mxu0 0.0
        %552 = vmatpush1.msra.mxu0 0.0
        %553 = vmatprep.subr.mxu0 0.0
        %554 = vmatpush1.msra.mxu0 0.0
        %555 = vmatprep.subr.mxu0 0.0
        %556 = vmatpush1.msra.mxu0 0.0
        %557 = vmatprep.subr.mxu0 0.0
        %558 = vmatpush1.msra.mxu0 0.0
        %559 = vmatprep.subr.mxu0 0.0
        %560 = vmatpush1.msra.mxu0 0.0
        %561 = vmatprep.subr.mxu0 0.0
        %562 = vmatpush1.msra.mxu0 0.0
        %563 = vmatprep.subr.mxu0 0.0
        %564 = vmatpush1.msra.mxu0 0.0
        %565 = vmatprep.subr.mxu0 0.0
        %566 = vmatpush1.msra.mxu0 0.0
        %567 = vmatprep.subr.mxu0 0.0
        %568 = vmatpush1.msra.mxu0 0.0
        %569 = vmatprep.subr.mxu0 0.0
        %570 = vmatpush1.msra.mxu0 0.0
        %571 = vmatprep.subr.mxu0 0.0
        %572 = vmatpush1.msra.mxu0 0.0
        %573 = vmatprep.subr.mxu0 0.0
        %574 = vmatpush1.msra.mxu0 0.0
        %575 = vmatprep.subr.mxu0 0.0
        %576 = vmatpush1.msra.mxu0 0.0
        %577 = vmatprep.subr.mxu0 0.0
        %578 = vmatpush1.msra.mxu0 0.0
        %579 = vmatprep.subr.mxu0 0.0
        %580 = vmatpush1.msra.mxu0 0.0
        %581 = vmatprep.subr.mxu0 0.0
        %582 = vmatpush1.msra.mxu0 0.0
        %583 = vmatprep.subr.mxu0 0.0
        %584 = vmatpush1.msra.mxu0 0.0
        %585 = vmatprep.subr.mxu0 0.0
        %586 = vmatpush1.msra.mxu0 0.0
        %587 = vmatprep.subr.mxu0 0.0
        %588 = vmatpush1.msra.mxu0 0.0
        %589 = vmatprep.subr.mxu0 0.0
        %590 = vmatpush1.msra.mxu0 0.0
        %591 = vmatprep.subr.mxu0 0.0
        %592 = vmatpush1.msra.mxu0 0.0
        %593 = vmatprep.subr.mxu0 0.0
        %594 = vmatpush1.msra.mxu0 0.0
        %595 = vmatprep.subr.mxu0 0.0
        %596 = vmatpush1.msra.mxu0 0.0
        %597 = vmatprep.mubr.f32.mxu0 0.0
        %598 = vmatmul.mubr.f32.gmra.mrb[0].mxu0 %v528
        %v599 = vpop.f32.mrb[0].mxu0
        %v600 = vadd.f32 %v524, %v599
        %v601 = vpop.f32.mrb[0].mxu0
        %602 = vmatprep.mubr.f32.mxu0 0.0
        %603 = vmatmul.mubr.f32.gmra.mrb[0].mxu0 %v531
        %v604 = vpop.f32.mrb[0].mxu0
        %v605 = vadd.f32 %v525, %v604
        %v606 = vpop.f32.mrb[0].mxu0
        %607 = vdwg.mxu0
        %vm608 = vcmp.ge.f32.partialorder %v600, 0.0
        %vm609 = vcmp.ge.f32.partialorder %v605, 0.0
        %v610 = vmul.f32 %v600, 0.01
        %v611 = vmul.f32 %v605, 0.01
        %v612 = vsel %vm608, %v600, %v610
        %v613 = vsel %vm609, %v605, %v611
        %vm614 = vcmask 7168
        %615 = vst.msk [vmem:[%s310] sm:$0xff] %vm614, %v612
        %616 = vst.msk [vmem:[%s310 + $0x8] sm:$0xff] %vm614, %v613
      $region64: #{tpu_custom_call.1} parent=47 // pred_fallthru
        _
      %s617 = smul.u32 %s22, %s23
      %s618 = smul.u32 2, %s617
      %p619 = scmp.lt.s32.totalorder %s618, 1
      %s620 = scalar_select %p619, %s618, 1
      %s621 = smul.addr %s620, 8
      %s622 = scalar_lea.vmem %s7, %s621
      // Predicated region
      $region65: #{tpu_custom_call.1} parent=47 // pred_check
        %p623 = pneg %p206
      $region66: #{tpu_custom_call.1} parent=47 // pred_check_branch
        %625 = sbr.rel (%p623) target = $region68
      $region67: #{tpu_custom_call.1} parent=47 // pred_region
        %s626 = smul.u32 %s22, %s23
        %s627 = smul.u32 2, %s626
      $region68: #{tpu_custom_call.1} parent=47 // pred_fallthru
        _
    $region48: #{tpu_custom_call.1} parent=5 // pred_fallthru
      _
    %p628 = scmp.le.s32.totalorder 2, %s13
    // Predicated region
    $region69: #{tpu_custom_call.1} parent=5 // pred_check
      %p629 = pneg %p628
    $region70: #{tpu_custom_call.1} parent=5 // pred_check_branch
      %631 = sbr.rel (%p629) target = $region72
    $region71: #{tpu_custom_call.1} parent=5 // pred_region
      %s632 = ssub.s32 %s13, 2
      // Predicated region
      $region73: #{tpu_custom_call.1} parent=71 // pred_check
        %p633 = pneg %p212
      $region74: #{tpu_custom_call.1} parent=71 // pred_check_branch
        %635 = sbr.rel (%p633) target = $region76
      $region75: #{tpu_custom_call.1} parent=71 // pred_region
        %s636 = smul.u32 %s24, %s25
        %s637 = smul.u32 2, %s636
        %p638 = scmp.lt.s32.totalorder %s637, 1
        %s639 = scalar_select %p638, %s637, 1
        %s640 = smul.addr %s639, 8
        %s641 = scalar_lea.vmem %s7, %s640
      $region76: #{tpu_custom_call.1} parent=71 // pred_fallthru
        _
    $region72: #{tpu_custom_call.1} parent=5 // pred_fallthru
      _
  $region6: #{tpu_custom_call.1} parent=0 // loop_footer
    %s17 = sadd.s32 1, %s13
  $region7: #{tpu_custom_call.1} parent=0 // loop_footer_branch
    %12 = sbr.rel target = $region3
  $region8: #{tpu_custom_call.1} parent=0 // loop_exit
    _

</llo_original>
